<compile_context>
chip_gen: v6e
topology: v6e:2x2x1
jax: 0.10.0
libtpu: 0.0.40
codegen_flags: <defaults>
</compile_context>

<pallas_src>
import jax
import jax.numpy as jnp
from jax.experimental import pallas as pl
from jax.experimental.pallas import tpu as pltpu

K_PAD = 128    # state_dim + action_dim (=3) -> one full lane group
H1_PAD = 512   # 400 -> 4 * 128 lanes
H2_PAD = 384   # 300 -> 3 * 128 lanes
ROW_TILE = 16  # batch-block granularity (bf16 sublane tile)


def _round_up(n, m):
    return ((n + m - 1) // m) * m


def critic_kernel(x_ref, w1_ref, b1_ref, w2_ref, b2_ref, w3_ref, b3_ref, o_ref):
    # ---- fc1: [blk, 128] x [128, 512] bf16 MXU matmul, f32 accumulate.
    h1 = jnp.dot(x_ref[...], w1_ref[...],
                 preferred_element_type=jnp.float32) + b1_ref[...]
    h1 = jnp.maximum(h1, 0.0).astype(jnp.bfloat16)          # [blk, H1_PAD]

    # ---- fc2: [blk, 512] x [512, 384] bf16 MXU matmul (dominant compute).
    h2 = jnp.dot(h1, w2_ref[...],
                 preferred_element_type=jnp.float32) + b2_ref[...]
    h2 = jnp.maximum(h2, 0.0).astype(jnp.bfloat16)          # [blk, H2_PAD]

    # ---- fc3: reduce over 384 lanes folded into the MXU via a [384, 128] slab
    #      whose column 0 is w3 (rest zero); take column 0 of the result.
    v = jnp.dot(h2, w3_ref[...], preferred_element_type=jnp.float32)  # [blk, 128]
    o_ref[...] = (v[:, 0:1] + b3_ref[...]).astype(o_ref.dtype)        # [blk, 1]


def critic_forward(state, action, packed_params, *, max_batch_block=1024):
    """state: [B, state_dim], action: [B, action_dim] -> value: [B, 1]."""
    w1, b1, w2, b2, w3, b3 = packed_params
    state = state.astype(jnp.float32)
    action = action.astype(jnp.float32)
    B = state.shape[0]
    K = state.shape[1] + action.shape[1]

    # The concat of (state, action) is fused into the same pad that lane-aligns
    # fc1's contraction dim to K_PAD.
    x = jnp.concatenate([state, action], axis=1)

    # Block sizing: >= 2 grid steps whenever the batch exceeds one row tile
    # (so both v7x TensorCores get work); blocks capped at max_batch_block to
    # amortize per-step overhead; ragged batches are zero-padded, never sent
    # down an untiled fallback.
    if B <= ROW_TILE:
        n_steps = 1
    else:
        n_steps = max(2, pl.cdiv(B, max_batch_block))
    block = _round_up(pl.cdiv(B, n_steps), ROW_TILE)
    b_pad = n_steps * block

    x = jnp.pad(x, ((0, b_pad - B), (0, K_PAD - K))).astype(jnp.bfloat16)

    weights = (w1, b1, w2, b2, w3, b3)
    out = pl.pallas_call(
        critic_kernel,
        out_shape=jax.ShapeDtypeStruct((b_pad, 1), jnp.float32),
        grid=(n_steps,),
        in_specs=[
            pl.BlockSpec((block, K_PAD), lambda i: (i, 0)),   # x (batch-tiled)
            pl.BlockSpec(w1.shape, lambda i: (0, 0)),          # weights stay
            pl.BlockSpec(b1.shape, lambda i: (0, 0)),          # VMEM-resident
            pl.BlockSpec(w2.shape, lambda i: (0, 0)),
            pl.BlockSpec(b2.shape, lambda i: (0, 0)),
            pl.BlockSpec(w3.shape, lambda i: (0, 0)),
            pl.BlockSpec(b3.shape, lambda i: (0, 0)),
        ],
        out_specs=pl.BlockSpec((block, 1), lambda i: (i, 0)),
        compiler_params=pltpu.CompilerParams(
            dimension_semantics=("parallel",)),
    )(x, *weights)
    return out[:B]


def init_critic_params(key, state_dim, action_dim):
    """nn.Linear-style init (U[-1/sqrt(fan_in), +]); weights stored [in, out]."""
    dims = [(state_dim + action_dim, 400), (400, 300), (300, 1)]
    params = []
    for (fan_in, fan_out) in dims:
        key, kw, kb = jax.random.split(key, 3)
        bound = 1.0 / jnp.sqrt(jnp.float32(fan_in))
        w = jax.random.uniform(kw, (fan_in, fan_out), jnp.float32, -bound, bound)
        b = jax.random.uniform(kb, (1, fan_out), jnp.float32, -bound, bound)
        params += [w, b]
    return tuple(params)


def pack_critic_params(params):
    """One-time packing: zero-pad every dim to lane/sublane multiples and cast
    matmul operands to bf16 (zero rows/cols are mathematically inert through
    ReLU and the downstream dots). fc3's weight becomes a [H2_PAD, 128] slab
    with w3 in column 0 so the final reduction runs on the MXU."""
    w1, b1, w2, b2, w3, b3 = params
    k_in = w1.shape[0]
    w1p = jnp.pad(w1, ((0, K_PAD - k_in), (0, H1_PAD - w1.shape[1])))
    b1p = jnp.pad(b1, ((0, 0), (0, H1_PAD - b1.shape[1])))
    w2p = jnp.pad(w2, ((0, H1_PAD - w2.shape[0]), (0, H2_PAD - w2.shape[1])))
    b2p = jnp.pad(b2, ((0, 0), (0, H2_PAD - b2.shape[1])))
    w3p = jnp.pad(w3, ((0, H2_PAD - w3.shape[0]), (0, 128 - w3.shape[1])))
    return (w1p.astype(jnp.bfloat16), b1p,
            w2p.astype(jnp.bfloat16), b2p,
            w3p.astype(jnp.bfloat16), b3)          # b3: [1, 1] f32


def critic_reference(state, action, params):
    w1, b1, w2, b2, w3, b3 = params
    x = jnp.concatenate([state, action], axis=1).astype(jnp.float32)
    h1 = jnp.maximum(x @ w1 + b1, 0.0)
    h2 = jnp.maximum(h1 @ w2 + b2, 0.0)
    return h2 @ w3 + b3


if __name__ == "__main__":
    # MountainCarContinuous-v0: state_dim = 2, action_dim = 1.
    STATE_DIM, ACTION_DIM = 2, 1

    key = jax.random.PRNGKey(0)
    key, kp = jax.random.split(key)
    params = init_critic_params(kp, STATE_DIM, ACTION_DIM)
    packed = pack_critic_params(params)

    # Exercise both the tiny single-step path and the padded multi-step
    # (dual-TensorCore) path.
    for batch in (8, 200):
        key, ks, ka = jax.random.split(key, 3)
        state = jax.random.normal(ks, (batch, STATE_DIM), jnp.float32)
        action = jax.random.normal(ka, (batch, ACTION_DIM), jnp.float32)

        value = critic_forward(state, action, packed)
        jax.block_until_ready(value)

        ref = critic_reference(state, action, params)
        assert value.shape == (batch, 1), value.shape
        # bf16 matmul operands -> relaxed tolerance vs the f32 reference.
        assert jnp.allclose(value, ref, atol=2e-2, rtol=2e-2), (
            float(jnp.max(jnp.abs(value - ref))))

    print("KERNEL_OK")
</pallas_src>

<mosaic_0001>
module attributes {stable_mosaic.version = 11 : i64} {
  func.func @critic_kernel(%arg0: i32, %arg1: memref<16x128xbf16, #tpu.memory_space<vmem>>, %arg2: memref<128x512xbf16, #tpu.memory_space<vmem>>, %arg3: memref<1x512xf32, #tpu.memory_space<vmem>>, %arg4: memref<512x384xbf16, #tpu.memory_space<vmem>>, %arg5: memref<1x384xf32, #tpu.memory_space<vmem>>, %arg6: memref<384x128xbf16, #tpu.memory_space<vmem>>, %arg7: memref<1x1xf32, #tpu.memory_space<vmem>>, %arg8: memref<16x1xf32, #tpu.memory_space<vmem>>) attributes {dimension_semantics = [#tpu.dimension_semantics<parallel>], iteration_bounds = array<i64: 1>, scalar_prefetch = 0 : i64, scratch_operands = 0 : i64, tpu.core_type = #tpu.core_type<tc>, window_params = [{transform_indices = @transform_0, window_bounds = array<i64: 16, 128>}, {pipeline_mode = #tpu.pipeline_mode<synchronous>, transform_indices = @transform_1, window_bounds = array<i64: 128, 512>}, {pipeline_mode = #tpu.pipeline_mode<synchronous>, transform_indices = @transform_2, window_bounds = array<i64: 1, 512>}, {pipeline_mode = #tpu.pipeline_mode<synchronous>, transform_indices = @transform_3, window_bounds = array<i64: 512, 384>}, {pipeline_mode = #tpu.pipeline_mode<synchronous>, transform_indices = @transform_4, window_bounds = array<i64: 1, 384>}, {pipeline_mode = #tpu.pipeline_mode<synchronous>, transform_indices = @transform_5, window_bounds = array<i64: 384, 128>}, {pipeline_mode = #tpu.pipeline_mode<synchronous>, transform_indices = @transform_6, window_bounds = array<i64: 1, 1>}, {transform_indices = @transform_7, window_bounds = array<i64: 16, 1>}]} {
    %c0 = arith.constant 0 : index
    %c0_0 = arith.constant 0 : index
    %0 = vector.load %arg1[%c0, %c0_0] : memref<16x128xbf16, #tpu.memory_space<vmem>>, vector<16x128xbf16>
    %c0_1 = arith.constant 0 : index
    %c0_2 = arith.constant 0 : index
    %1 = vector.load %arg2[%c0_1, %c0_2] : memref<128x512xbf16, #tpu.memory_space<vmem>>, vector<128x512xbf16>
    %cst = arith.constant dense<0.000000e+00> : vector<16x512xf32>
    %2 = tpu.matmul %0, %1, %cst {dimension_numbers = #tpu.dot_dimension_numbers<[1], [0], [0], [1], [0, 0, 1, 1], [], []>} : vector<16x128xbf16>, vector<128x512xbf16>, vector<16x512xf32> -> vector<16x512xf32>
    %c0_3 = arith.constant 0 : index
    %c0_4 = arith.constant 0 : index
    %3 = vector.load %arg3[%c0_3, %c0_4] : memref<1x512xf32, #tpu.memory_space<vmem>>, vector<1x512xf32>
    %4 = vector.broadcast %3 : vector<1x512xf32> to vector<16x512xf32>
    %5 = arith.addf %2, %4 : vector<16x512xf32>
    %cst_5 = arith.constant 0.000000e+00 : f32
    %6 = vector.broadcast %cst_5 : f32 to vector<16x512xf32>
    %7 = arith.maximumf %5, %6 : vector<16x512xf32>
    %8 = arith.truncf %7 : vector<16x512xf32> to vector<16x512xbf16>
    %c0_6 = arith.constant 0 : index
    %c0_7 = arith.constant 0 : index
    %9 = vector.load %arg4[%c0_6, %c0_7] : memref<512x384xbf16, #tpu.memory_space<vmem>>, vector<512x384xbf16>
    %cst_8 = arith.constant dense<0.000000e+00> : vector<16x384xf32>
    %10 = tpu.matmul %8, %9, %cst_8 {dimension_numbers = #tpu.dot_dimension_numbers<[1], [0], [0], [1], [0, 0, 1, 1], [], []>} : vector<16x512xbf16>, vector<512x384xbf16>, vector<16x384xf32> -> vector<16x384xf32>
    %c0_9 = arith.constant 0 : index
    %c0_10 = arith.constant 0 : index
    %11 = vector.load %arg5[%c0_9, %c0_10] : memref<1x384xf32, #tpu.memory_space<vmem>>, vector<1x384xf32>
    %12 = vector.broadcast %11 : vector<1x384xf32> to vector<16x384xf32>
    %13 = arith.addf %10, %12 : vector<16x384xf32>
    %cst_11 = arith.constant 0.000000e+00 : f32
    %14 = vector.broadcast %cst_11 : f32 to vector<16x384xf32>
    %15 = arith.maximumf %13, %14 : vector<16x384xf32>
    %16 = arith.truncf %15 : vector<16x384xf32> to vector<16x384xbf16>
    %c0_12 = arith.constant 0 : index
    %c0_13 = arith.constant 0 : index
    %17 = vector.load %arg6[%c0_12, %c0_13] : memref<384x128xbf16, #tpu.memory_space<vmem>>, vector<384x128xbf16>
    %cst_14 = arith.constant dense<0.000000e+00> : vector<16x128xf32>
    %18 = tpu.matmul %16, %17, %cst_14 {dimension_numbers = #tpu.dot_dimension_numbers<[1], [0], [0], [1], [0, 0, 1, 1], [], []>} : vector<16x384xbf16>, vector<384x128xbf16>, vector<16x128xf32> -> vector<16x128xf32>
    %19 = vector.extract_strided_slice %18 {offsets = [0, 0], sizes = [16, 1], strides = [1, 1]} : vector<16x128xf32> to vector<16x1xf32>
    %c0_15 = arith.constant 0 : index
    %c0_16 = arith.constant 0 : index
    %20 = vector.load %arg7[%c0_15, %c0_16] : memref<1x1xf32, #tpu.memory_space<vmem>>, vector<1x1xf32>
    %21 = vector.broadcast %20 : vector<1x1xf32> to vector<16x1xf32>
    %22 = arith.addf %19, %21 : vector<16x1xf32>
    %c0_17 = arith.constant 0 : index
    %c0_18 = arith.constant 0 : index
    %23 = vector.load %arg8[%c0_17, %c0_18] : memref<16x1xf32, #tpu.memory_space<vmem>>, vector<16x1xf32>
    tpu.vector_store %arg8[%c0_17, %c0_18], %22 {strides = array<i32>} : memref<16x1xf32, #tpu.memory_space<vmem>>, vector<16x1xf32>,
    return
  }
  func.func @transform_0(%arg0: i32) -> (i32, i32) {
    %c0_i32 = arith.constant 0 : i32
    %c0_i32_0 = arith.constant 0 : i32
    return %arg0, %c0_i32 : i32, i32
  }
  func.func @transform_1(%arg0: i32) -> (i32, i32) {
    %c0_i32 = arith.constant 0 : i32
    %c0_i32_0 = arith.constant 0 : i32
    %c0_i32_1 = arith.constant 0 : i32
    return %c0_i32, %c0_i32_0 : i32, i32
  }
  func.func @transform_2(%arg0: i32) -> (i32, i32) {
    %c0_i32 = arith.constant 0 : i32
    %c0_i32_0 = arith.constant 0 : i32
    %c0_i32_1 = arith.constant 0 : i32
    return %c0_i32, %c0_i32_0 : i32, i32
  }
  func.func @transform_3(%arg0: i32) -> (i32, i32) {
    %c0_i32 = arith.constant 0 : i32
    %c0_i32_0 = arith.constant 0 : i32
    %c0_i32_1 = arith.constant 0 : i32
    return %c0_i32, %c0_i32_0 : i32, i32
  }
  func.func @transform_4(%arg0: i32) -> (i32, i32) {
    %c0_i32 = arith.constant 0 : i32
    %c0_i32_0 = arith.constant 0 : i32
    %c0_i32_1 = arith.constant 0 : i32
    return %c0_i32, %c0_i32_0 : i32, i32
  }
  func.func @transform_5(%arg0: i32) -> (i32, i32) {
    %c0_i32 = arith.constant 0 : i32
    %c0_i32_0 = arith.constant 0 : i32
    %c0_i32_1 = arith.constant 0 : i32
    return %c0_i32, %c0_i32_0 : i32, i32
  }
  func.func @transform_6(%arg0: i32) -> (i32, i32) {
    %c0_i32 = arith.constant 0 : i32
    %c0_i32_0 = arith.constant 0 : i32
    %c0_i32_1 = arith.constant 0 : i32
    return %c0_i32, %c0_i32_0 : i32, i32
  }
  func.func @transform_7(%arg0: i32) -> (i32, i32) {
    %c0_i32 = arith.constant 0 : i32
    %c0_i32_0 = arith.constant 0 : i32
    return %arg0, %c0_i32 : i32, i32
  }
}

</mosaic_0001>

<llo_original>
// kernel: tpu_custom_call.1
$region0: #{tpu_custom_call.1}
  #allocation0 [shape = 'u32[]', space=smem, size = 0x4, offset = 0x4, fixed_abs, tag = 'smem constant byte address 0x4 - core index']
  #allocation1 [shape = 'u32[144,128]{1,0:T(1,128)}', space=vmem, size = 0x12000, scoped, tag = 'internal scratch']
  #allocation2 [shape = 'f32[1,1]{1,0:T(1,128)S(1)}', space=vmem, size = 0x200, scoped, tag = 'scoped memory for tpu_custom_call.1']
  %s0 = inlined_call_operand.hbm [shape: bf16[16,128], index: 0, kind: input, shape index: {}]
  %s1 = inlined_call_operand.hbm [shape: bf16[128,512], index: 1, kind: input, shape index: {}]
  %s2 = inlined_call_operand.vmem [shape: f32[1,512], index: 2, kind: input, shape index: {}]
  %s3 = inlined_call_operand.hbm [shape: bf16[512,384], index: 3, kind: input, shape index: {}]
  %s4 = inlined_call_operand.vmem [shape: f32[1,384], index: 4, kind: input, shape index: {}]
  %s5 = inlined_call_operand.hbm [shape: bf16[384,128], index: 5, kind: input, shape index: {}]
  %s6 = inlined_call_operand.<no memory space> [shape: f32[1,1], index: 6, kind: input, shape index: {}]
  %s7 = inlined_call_operand.vmem [shape: f32[16,1], index: 7, kind: output, shape index: {}]
  %s8 = sld [smem:[#allocation0]]
  $region54: #{tpu_custom_call.1} parent=0
    _
  %s10 = ssub.s32 1, %s8
  %s11 = scalar_select 0, %s10, %s8
  %v12 = vstv %s6
  %13 = vst [vmem:[#allocation2] sm:$0x1] %v12
  $region1: #{tpu_custom_call.1} parent=0
    #allocation3 [shape = 'u8[4096]{0}', space=vmem, size = 0x1000, scoped, tag = 'input window, operand 0, single buffered']
    #allocation4 [shape = 's32[1]{0}', space=sflag, size = 0x4, scoped, tag = 'scoped memory for tpu_custom_call.1']
    #allocation5 [shape = 'u8[131072]{0}', space=vmem, size = 0x20000, scoped, tag = 'input window, operand 1, single buffered']
    #allocation6 [shape = 's32[1]{0}', space=sflag, size = 0x4, scoped, tag = 'scoped memory for tpu_custom_call.1']
    #allocation7 [shape = 'u8[393216]{0}', space=vmem, size = 0x60000, scoped, tag = 'input window, operand 3, single buffered']
    #allocation8 [shape = 'u8[98304]{0}', space=vmem, size = 0x18000, scoped, tag = 'input window, operand 5, single buffered']
    #allocation9 [shape = 's32[1]{0}', space=sflag, size = 0x4, scoped, tag = 'scoped memory for tpu_custom_call.1']
    %14 = vsyncpa [#allocation4], 0
    %15 = vsyncpa [#allocation6], 0
    %16 = vsyncpa [#allocation9], 0
    // Predicated region
    $region2: #{tpu_custom_call.1} parent=1 // pred_check
      _
    $region3: #{tpu_custom_call.1} parent=1 // pred_check_branch
      %18 = sbr.rel (0) target = $region5
    $region4: #{tpu_custom_call.1} parent=1 // pred_region
      %s20 = ssub.s32 128, 128
      %21 = vsyncadd [#allocation4], %s20
      %s22 = sshll.u32 [#allocation3], 4
      %s23 = int_to_ptr.vmem [resolvable:$true] %s22
      %28 = dma.hbm_to_vmem [thread:$0]  %s0, 128, %s23, [#allocation4], 64, 64, 4
    $region5: #{tpu_custom_call.1} parent=1 // pred_fallthru
      _
    // Predicated region
    $region6: #{tpu_custom_call.1} parent=1 // pred_check
      _
    $region7: #{tpu_custom_call.1} parent=1 // pred_check_branch
      %30 = sbr.rel (0) target = $region9
    $region8: #{tpu_custom_call.1} parent=1 // pred_region
      %s32 = ssub.s32 4096, 4096
      %33 = vsyncadd [#allocation6], %s32
      %s34 = sshll.u32 [#allocation5], 4
      %s35 = int_to_ptr.vmem [resolvable:$true] %s34
      %40 = dma.hbm_to_vmem [thread:$0]  %s1, 4096, %s35, [#allocation6], 256, 256, 16
    $region9: #{tpu_custom_call.1} parent=1 // pred_fallthru
      _
    // Predicated region
    $region10: #{tpu_custom_call.1} parent=1 // pred_check
      _
    $region11: #{tpu_custom_call.1} parent=1 // pred_check_branch
      %42 = sbr.rel (0) target = $region13
    $region12: #{tpu_custom_call.1} parent=1 // pred_region
      _
    $region13: #{tpu_custom_call.1} parent=1 // pred_fallthru
      _
    // Predicated region
    $region14: #{tpu_custom_call.1} parent=1 // pred_check
      _
    $region15: #{tpu_custom_call.1} parent=1 // pred_check_branch
      %44 = sbr.rel (0) target = $region17
    $region16: #{tpu_custom_call.1} parent=1 // pred_region
      %s46 = ssub.s32 12288, 12288
      %47 = vsyncadd [#allocation6], %s46
      %s48 = sshll.u32 [#allocation7], 4
      %s49 = int_to_ptr.vmem [resolvable:$true] %s48
      %54 = dma.hbm_to_vmem [thread:$0]  %s3, 12288, %s49, [#allocation6], 192, 192, 12
    $region17: #{tpu_custom_call.1} parent=1 // pred_fallthru
      _
    // Predicated region
    $region18: #{tpu_custom_call.1} parent=1 // pred_check
      _
    $region19: #{tpu_custom_call.1} parent=1 // pred_check_branch
      %56 = sbr.rel (0) target = $region21
    $region20: #{tpu_custom_call.1} parent=1 // pred_region
      _
    $region21: #{tpu_custom_call.1} parent=1 // pred_fallthru
      _
    // Predicated region
    $region22: #{tpu_custom_call.1} parent=1 // pred_check
      _
    $region23: #{tpu_custom_call.1} parent=1 // pred_check_branch
      %58 = sbr.rel (0) target = $region25
    $region24: #{tpu_custom_call.1} parent=1 // pred_region
      %s60 = ssub.s32 3072, 3072
      %61 = vsyncadd [#allocation9], %s60
      %s62 = sshll.u32 [#allocation8], 4
      %s63 = int_to_ptr.vmem [resolvable:$true] %s62
      %68 = dma.hbm_to_vmem [thread:$0]  %s5, 3072, %s63, [#allocation9], 64, 64, 4
    $region25: #{tpu_custom_call.1} parent=1 // pred_fallthru
      _
    // Predicated region
    $region26: #{tpu_custom_call.1} parent=1 // pred_check
      _
    $region27: #{tpu_custom_call.1} parent=1 // pred_check_branch
      %70 = sbr.rel (0) target = $region29
    $region28: #{tpu_custom_call.1} parent=1 // pred_region
      _
    $region29: #{tpu_custom_call.1} parent=1 // pred_fallthru
      _
    // Predicated region
    $region30: #{tpu_custom_call.1} parent=1 // pred_check
      _
    $region31: #{tpu_custom_call.1} parent=1 // pred_check_branch
      %72 = sbr.rel (0) target = $region33
    $region32: #{tpu_custom_call.1} parent=1 // pred_region
      %73 = dma.done [#allocation4], 128
    $region33: #{tpu_custom_call.1} parent=1 // pred_fallthru
      _
    // Predicated region
    $region34: #{tpu_custom_call.1} parent=1 // pred_check
      _
    $region35: #{tpu_custom_call.1} parent=1 // pred_check_branch
      %75 = sbr.rel (0) target = $region37
    $region36: #{tpu_custom_call.1} parent=1 // pred_region
      %76 = dma.done [#allocation6], 4096
    $region37: #{tpu_custom_call.1} parent=1 // pred_fallthru
      _
    // Predicated region
    $region38: #{tpu_custom_call.1} parent=1 // pred_check
      _
    $region39: #{tpu_custom_call.1} parent=1 // pred_check_branch
      %78 = sbr.rel (0) target = $region41
    $region40: #{tpu_custom_call.1} parent=1 // pred_region
      %79 = dma.done [#allocation6], 12288
    $region41: #{tpu_custom_call.1} parent=1 // pred_fallthru
      _
    // Predicated region
    $region42: #{tpu_custom_call.1} parent=1 // pred_check
      _
    $region43: #{tpu_custom_call.1} parent=1 // pred_check_branch
      %81 = sbr.rel (0) target = $region45
    $region44: #{tpu_custom_call.1} parent=1 // pred_region
      %82 = dma.done [#allocation9], 3072
    $region45: #{tpu_custom_call.1} parent=1 // pred_fallthru
      _
    %v84 = vld [vmem:[#allocation3] sm:$0xf]
    %v85 = vld [vmem:[#allocation3 + $0x4] sm:$0xf]
    %v86 = vld [vmem:[#allocation5] sm:$0xff]
    %v87 = vld [vmem:[#allocation5 + $0x8] sm:$0xff]
    %v88 = vld [vmem:[#allocation5 + $0x10] sm:$0xff]
    %v89 = vld [vmem:[#allocation5 + $0x18] sm:$0xff]
    %v90 = vld [vmem:[#allocation5 + $0x20] sm:$0xff]
    %v91 = vld [vmem:[#allocation5 + $0x28] sm:$0xff]
    %v92 = vld [vmem:[#allocation5 + $0x30] sm:$0xff]
    %v93 = vld [vmem:[#allocation5 + $0x38] sm:$0xff]
    %v94 = vld [vmem:[#allocation5 + $0x40] sm:$0xff]
    %v95 = vld [vmem:[#allocation5 + $0x48] sm:$0xff]
    %v96 = vld [vmem:[#allocation5 + $0x50] sm:$0xff]
    %v97 = vld [vmem:[#allocation5 + $0x58] sm:$0xff]
    %v98 = vld [vmem:[#allocation5 + $0x60] sm:$0xff]
    %v99 = vld [vmem:[#allocation5 + $0x68] sm:$0xff]
    %v100 = vld [vmem:[#allocation5 + $0x70] sm:$0xff]
    %v101 = vld [vmem:[#allocation5 + $0x78] sm:$0xff]
    %v102 = vld [vmem:[#allocation5 + $0x80] sm:$0xff]
    %v103 = vld [vmem:[#allocation5 + $0x88] sm:$0xff]
    %v104 = vld [vmem:[#allocation5 + $0x90] sm:$0xff]
    %v105 = vld [vmem:[#allocation5 + $0x98] sm:$0xff]
    %v106 = vld [vmem:[#allocation5 + $0xa0] sm:$0xff]
    %v107 = vld [vmem:[#allocation5 + $0xa8] sm:$0xff]
    %v108 = vld [vmem:[#allocation5 + $0xb0] sm:$0xff]
    %v109 = vld [vmem:[#allocation5 + $0xb8] sm:$0xff]
    %v110 = vld [vmem:[#allocation5 + $0xc0] sm:$0xff]
    %v111 = vld [vmem:[#allocation5 + $0xc8] sm:$0xff]
    %v112 = vld [vmem:[#allocation5 + $0xd0] sm:$0xff]
    %v113 = vld [vmem:[#allocation5 + $0xd8] sm:$0xff]
    %v114 = vld [vmem:[#allocation5 + $0xe0] sm:$0xff]
    %v115 = vld [vmem:[#allocation5 + $0xe8] sm:$0xff]
    %v116 = vld [vmem:[#allocation5 + $0xf0] sm:$0xff]
    %v117 = vld [vmem:[#allocation5 + $0xf8] sm:$0xff]
    %v118 = vld [vmem:[%s2] sm:$0xf]
    %v120 = vlaneseq
    %v121 = vshrl.u32 %v120, 7
    %v122 = vsub.s32 0, %v121
    %v123 = vrot.slane %v118, %v122
    %v124 = vlaneseq
    %v125 = vshrl.u32 %v124, 7
    %v126 = vsub.s32 1, %v125
    %v127 = vrot.slane %v118, %v126
    %v128 = vlaneseq
    %v129 = vshrl.u32 %v128, 7
    %v130 = vsub.s32 2, %v129
    %v131 = vrot.slane %v118, %v130
    %v132 = vlaneseq
    %v133 = vshrl.u32 %v132, 7
    %v134 = vsub.s32 3, %v133
    %v135 = vrot.slane %v118, %v134
    %v142 = vunpack.c.l.b16 %v84
    %v143 = vunpack.c.l.b16 %v85
    %v144 = vpack.c.b16 %v143, %v142
    %v178 = vunpack.c.l.b16 %v86
    %v179 = vunpack.c.h.b16 %v86
    %v180 = vunpack.c.l.b16 %v87
    %v181 = vunpack.c.h.b16 %v87
    %v182 = vunpack.c.l.b16 %v88
    %v183 = vunpack.c.h.b16 %v88
    %v184 = vunpack.c.l.b16 %v89
    %v185 = vunpack.c.h.b16 %v89
    %v186 = vunpack.c.l.b16 %v90
    %v187 = vunpack.c.h.b16 %v90
    %v188 = vunpack.c.l.b16 %v91
    %v189 = vunpack.c.h.b16 %v91
    %v190 = vunpack.c.l.b16 %v92
    %v191 = vunpack.c.h.b16 %v92
    %v192 = vunpack.c.l.b16 %v93
    %v193 = vunpack.c.h.b16 %v93
    %v194 = vunpack.c.l.b16 %v94
    %v195 = vunpack.c.h.b16 %v94
    %v196 = vunpack.c.l.b16 %v95
    %v197 = vunpack.c.h.b16 %v95
    %v198 = vunpack.c.l.b16 %v96
    %v199 = vunpack.c.h.b16 %v96
    %v200 = vunpack.c.l.b16 %v97
    %v201 = vunpack.c.h.b16 %v97
    %v202 = vunpack.c.l.b16 %v98
    %v203 = vunpack.c.h.b16 %v98
    %v204 = vunpack.c.l.b16 %v99
    %v205 = vunpack.c.h.b16 %v99
    %v206 = vunpack.c.l.b16 %v100
    %v207 = vunpack.c.h.b16 %v100
    %v208 = vunpack.c.l.b16 %v101
    %v209 = vunpack.c.h.b16 %v101
    %v210 = vunpack.c.l.b16 %v102
    %v211 = vunpack.c.h.b16 %v102
    %v212 = vunpack.c.l.b16 %v103
    %v213 = vunpack.c.h.b16 %v103
    %v214 = vunpack.c.l.b16 %v104
    %v215 = vunpack.c.h.b16 %v104
    %v216 = vunpack.c.l.b16 %v105
    %v217 = vunpack.c.h.b16 %v105
    %v218 = vunpack.c.l.b16 %v106
    %v219 = vunpack.c.h.b16 %v106
    %v220 = vunpack.c.l.b16 %v107
    %v221 = vunpack.c.h.b16 %v107
    %v222 = vunpack.c.l.b16 %v108
    %v223 = vunpack.c.h.b16 %v108
    %v224 = vunpack.c.l.b16 %v109
    %v225 = vunpack.c.h.b16 %v109
    %v226 = vunpack.c.l.b16 %v110
    %v227 = vunpack.c.h.b16 %v110
    %v228 = vunpack.c.l.b16 %v111
    %v229 = vunpack.c.h.b16 %v111
    %v230 = vunpack.c.l.b16 %v112
    %v231 = vunpack.c.h.b16 %v112
    %v232 = vunpack.c.l.b16 %v113
    %v233 = vunpack.c.h.b16 %v113
    %v234 = vunpack.c.l.b16 %v114
    %v235 = vunpack.c.h.b16 %v114
    %v236 = vunpack.c.l.b16 %v115
    %v237 = vunpack.c.h.b16 %v115
    %v238 = vunpack.c.l.b16 %v116
    %v239 = vunpack.c.h.b16 %v116
    %v240 = vunpack.c.l.b16 %v117
    %v241 = vunpack.c.h.b16 %v117
    %v242 = vpack.c.b16 %v182, %v178
    %v243 = vpack.c.b16 %v183, %v179
    %v244 = vpack.c.b16 %v184, %v180
    %v245 = vpack.c.b16 %v185, %v181
    %v246 = vpack.c.b16 %v190, %v186
    %v247 = vpack.c.b16 %v191, %v187
    %v248 = vpack.c.b16 %v192, %v188
    %v249 = vpack.c.b16 %v193, %v189
    %v250 = vpack.c.b16 %v198, %v194
    %v251 = vpack.c.b16 %v199, %v195
    %v252 = vpack.c.b16 %v200, %v196
    %v253 = vpack.c.b16 %v201, %v197
    %v254 = vpack.c.b16 %v206, %v202
    %v255 = vpack.c.b16 %v207, %v203
    %v256 = vpack.c.b16 %v208, %v204
    %v257 = vpack.c.b16 %v209, %v205
    %v258 = vpack.c.b16 %v214, %v210
    %v259 = vpack.c.b16 %v215, %v211
    %v260 = vpack.c.b16 %v216, %v212
    %v261 = vpack.c.b16 %v217, %v213
    %v262 = vpack.c.b16 %v222, %v218
    %v263 = vpack.c.b16 %v223, %v219
    %v264 = vpack.c.b16 %v224, %v220
    %v265 = vpack.c.b16 %v225, %v221
    %v266 = vpack.c.b16 %v230, %v226
    %v267 = vpack.c.b16 %v231, %v227
    %v268 = vpack.c.b16 %v232, %v228
    %v269 = vpack.c.b16 %v233, %v229
    %v270 = vpack.c.b16 %v238, %v234
    %v271 = vpack.c.b16 %v239, %v235
    %v272 = vpack.c.b16 %v240, %v236
    %v273 = vpack.c.b16 %v241, %v237
    %306 = vmatprep.subr.bf16.mxu0 %v271
    %307 = vmatpush1.bf16.msra.mxu0 %v270
    %308 = vmatprep.subr.bf16.mxu0 %v267
    %309 = vmatpush1.bf16.msra.mxu0 %v266
    %310 = vmatprep.subr.bf16.mxu0 %v263
    %311 = vmatpush1.bf16.msra.mxu0 %v262
    %312 = vmatprep.subr.bf16.mxu0 %v259
    %313 = vmatpush1.bf16.msra.mxu0 %v258
    %314 = vmatprep.subr.bf16.mxu0 %v255
    %315 = vmatpush1.bf16.msra.mxu0 %v254
    %316 = vmatprep.subr.bf16.mxu0 %v251
    %317 = vmatpush1.bf16.msra.mxu0 %v250
    %318 = vmatprep.subr.bf16.mxu0 %v247
    %319 = vmatpush1.bf16.msra.mxu0 %v246
    %320 = vmatprep.subr.bf16.mxu0 %v243
    %321 = vmatpush1.bf16.msra.mxu0 %v242
    %322 = vmatprep.subr.bf16.mxu0 0
    %323 = vmatpush2.bf16.msra.mxu0 0
    %324 = vmatprep.subr.bf16.mxu0 0
    %325 = vmatpush2.bf16.msra.mxu0 0
    %326 = vmatprep.subr.bf16.mxu0 0
    %327 = vmatpush2.bf16.msra.mxu0 0
    %328 = vmatprep.subr.bf16.mxu0 0
    %329 = vmatpush2.bf16.msra.mxu0 0
    %330 = vmatprep.subr.bf16.mxu0 0
    %331 = vmatpush2.bf16.msra.mxu0 0
    %332 = vmatprep.subr.bf16.mxu0 0
    %333 = vmatpush2.bf16.msra.mxu0 0
    %334 = vmatprep.subr.bf16.mxu0 0
    %335 = vmatpush2.bf16.msra.mxu0 0
    %336 = vmatprep.subr.bf16.mxu0 0
    %337 = vmatpush2.bf16.msra.mxu0 0
    %338 = vmatprep.mubr.bf16.mxu0 0
    %339 = vmatmul.mubr.bf16.gmra.mxu0 %v144
    %v340 = vpop.f32.mrf.mxu0
    %v341 = vadd.f32 %v123, %v340
    %v342 = vpop.f32.mrf.mxu0
    %v343 = vadd.f32 %v127, %v342
    %v344 = vpop.f32.mrf.mxu0
    %v345 = vadd.f32 %v123, %v344
    %v346 = vpop.f32.mrf.mxu0
    %v347 = vadd.f32 %v127, %v346
    %348 = vdwg.mxu0
    %349 = vmatprep.subr.bf16.mxu0 %v273
    %350 = vmatpush1.bf16.msra.mxu0 %v272
    %351 = vmatprep.subr.bf16.mxu0 %v269
    %352 = vmatpush1.bf16.msra.mxu0 %v268
    %353 = vmatprep.subr.bf16.mxu0 %v265
    %354 = vmatpush1.bf16.msra.mxu0 %v264
    %355 = vmatprep.subr.bf16.mxu0 %v261
    %356 = vmatpush1.bf16.msra.mxu0 %v260
    %357 = vmatprep.subr.bf16.mxu0 %v257
    %358 = vmatpush1.bf16.msra.mxu0 %v256
    %359 = vmatprep.subr.bf16.mxu0 %v253
    %360 = vmatpush1.bf16.msra.mxu0 %v252
    %361 = vmatprep.subr.bf16.mxu0 %v249
    %362 = vmatpush1.bf16.msra.mxu0 %v248
    %363 = vmatprep.subr.bf16.mxu0 %v245
    %364 = vmatpush1.bf16.msra.mxu0 %v244
    %365 = vmatprep.subr.bf16.mxu0 0
    %366 = vmatpush2.bf16.msra.mxu0 0
    %367 = vmatprep.subr.bf16.mxu0 0
    %368 = vmatpush2.bf16.msra.mxu0 0
    %369 = vmatprep.subr.bf16.mxu0 0
    %370 = vmatpush2.bf16.msra.mxu0 0
    %371 = vmatprep.subr.bf16.mxu0 0
    %372 = vmatpush2.bf16.msra.mxu0 0
    %373 = vmatprep.subr.bf16.mxu0 0
    %374 = vmatpush2.bf16.msra.mxu0 0
    %375 = vmatprep.subr.bf16.mxu0 0
    %376 = vmatpush2.bf16.msra.mxu0 0
    %377 = vmatprep.subr.bf16.mxu0 0
    %378 = vmatpush2.bf16.msra.mxu0 0
    %379 = vmatprep.subr.bf16.mxu0 0
    %380 = vmatpush2.bf16.msra.mxu0 0
    %381 = vmatprep.mubr.bf16.mxu0 0
    %382 = vmatmul.mubr.bf16.gmra.mxu0 %v144
    %v383 = vpop.f32.mrf.mxu0
    %v384 = vadd.f32 %v131, %v383
    %v385 = vpop.f32.mrf.mxu0
    %v386 = vadd.f32 %v135, %v385
    %v387 = vpop.f32.mrf.mxu0
    %v388 = vadd.f32 %v131, %v387
    %v389 = vpop.f32.mrf.mxu0
    %v390 = vadd.f32 %v135, %v389
    %391 = vdwg.mxu0
    %v392 = vmax.f32 %v341, 0.0
    %v393 = vmax.f32 %v343, 0.0
    %v394 = vmax.f32 %v384, 0.0
    %v395 = vmax.f32 %v386, 0.0
    %v396 = vmax.f32 %v345, 0.0
    %v397 = vmax.f32 %v347, 0.0
    %v398 = vmax.f32 %v388, 0.0
    %v399 = vmax.f32 %v390, 0.0
    %v400 = vpack.c.bf16 %v396, %v392
    %v401 = vpack.c.bf16 %v397, %v393
    %v402 = vpack.c.bf16 %v398, %v394
    %v403 = vpack.c.bf16 %v399, %v395
    %v404 = vld [vmem:[#allocation7] sm:$0xff]
    %v405 = vld [vmem:[#allocation7 + $0x8] sm:$0xf]
    %v406 = vld [vmem:[#allocation7 + $0xc] sm:$0xff]
    %v407 = vld [vmem:[#allocation7 + $0x14] sm:$0xf]
    %v408 = vld [vmem:[#allocation7 + $0x18] sm:$0xff]
    %v409 = vld [vmem:[#allocation7 + $0x20] sm:$0xf]
    %v410 = vld [vmem:[#allocation7 + $0x24] sm:$0xff]
    %v411 = vld [vmem:[#allocation7 + $0x2c] sm:$0xf]
    %v412 = vld [vmem:[#allocation7 + $0x30] sm:$0xff]
    %v413 = vld [vmem:[#allocation7 + $0x38] sm:$0xf]
    %v414 = vld [vmem:[#allocation7 + $0x3c] sm:$0xff]
    %v415 = vld [vmem:[#allocation7 + $0x44] sm:$0xf]
    %v416 = vld [vmem:[#allocation7 + $0x48] sm:$0xff]
    %v417 = vld [vmem:[#allocation7 + $0x50] sm:$0xf]
    %v418 = vld [vmem:[#allocation7 + $0x54] sm:$0xff]
    %v419 = vld [vmem:[#allocation7 + $0x5c] sm:$0xf]
    %v420 = vld [vmem:[#allocation7 + $0x60] sm:$0xff]
    %v421 = vld [vmem:[#allocation7 + $0x68] sm:$0xf]
    %v422 = vld [vmem:[#allocation7 + $0x6c] sm:$0xff]
    %v423 = vld [vmem:[#allocation7 + $0x74] sm:$0xf]
    %v424 = vld [vmem:[#allocation7 + $0x78] sm:$0xff]
    %v425 = vld [vmem:[#allocation7 + $0x80] sm:$0xf]
    %v426 = vld [vmem:[#allocation7 + $0x84] sm:$0xff]
    %v427 = vld [vmem:[#allocation7 + $0x8c] sm:$0xf]
    %v428 = vld [vmem:[#allocation7 + $0x90] sm:$0xff]
    %v429 = vld [vmem:[#allocation7 + $0x98] sm:$0xf]
    %v430 = vld [vmem:[#allocation7 + $0x9c] sm:$0xff]
    %v431 = vld [vmem:[#allocation7 + $0xa4] sm:$0xf]
    %v432 = vld [vmem:[#allocation7 + $0xa8] sm:$0xff]
    %v433 = vld [vmem:[#allocation7 + $0xb0] sm:$0xf]
    %v434 = vld [vmem:[#allocation7 + $0xb4] sm:$0xff]
    %v435 = vld [vmem:[#allocation7 + $0xbc] sm:$0xf]
    %v436 = vld [vmem:[#allocation7 + $0xc0] sm:$0xff]
    %v437 = vld [vmem:[#allocation7 + $0xc8] sm:$0xf]
    %v438 = vld [vmem:[#allocation7 + $0xcc] sm:$0xff]
    %v439 = vld [vmem:[#allocation7 + $0xd4] sm:$0xf]
    %v440 = vld [vmem:[#allocation7 + $0xd8] sm:$0xff]
    %v441 = vld [vmem:[#allocation7 + $0xe0] sm:$0xf]
    %v442 = vld [vmem:[#allocation7 + $0xe4] sm:$0xff]
    %v443 = vld [vmem:[#allocation7 + $0xec] sm:$0xf]
    %v444 = vld [vmem:[#allocation7 + $0xf0] sm:$0xff]
    %v445 = vld [vmem:[#allocation7 + $0xf8] sm:$0xf]
    %v446 = vld [vmem:[#allocation7 + $0xfc] sm:$0xff]
    %v447 = vld [vmem:[#allocation7 + $0x104] sm:$0xf]
    %v448 = vld [vmem:[#allocation7 + $0x108] sm:$0xff]
    %v449 = vld [vmem:[#allocation7 + $0x110] sm:$0xf]
    %v450 = vld [vmem:[#allocation7 + $0x114] sm:$0xff]
    %v451 = vld [vmem:[#allocation7 + $0x11c] sm:$0xf]
    %v452 = vld [vmem:[#allocation7 + $0x120] sm:$0xff]
    %v453 = vld [vmem:[#allocation7 + $0x128] sm:$0xf]
    %v454 = vld [vmem:[#allocation7 + $0x12c] sm:$0xff]
    %v455 = vld [vmem:[#allocation7 + $0x134] sm:$0xf]
    %v456 = vld [vmem:[#allocation7 + $0x138] sm:$0xff]
    %v457 = vld [vmem:[#allocation7 + $0x140] sm:$0xf]
    %v458 = vld [vmem:[#allocation7 + $0x144] sm:$0xff]
    %v459 = vld [vmem:[#allocation7 + $0x14c] sm:$0xf]
    %v460 = vld [vmem:[#allocation7 + $0x150] sm:$0xff]
    %v461 = vld [vmem:[#allocation7 + $0x158] sm:$0xf]
    %v462 = vld [vmem:[#allocation7 + $0x15c] sm:$0xff]
    %v463 = vld [vmem:[#allocation7 + $0x164] sm:$0xf]
    %v464 = vld [vmem:[#allocation7 + $0x168] sm:$0xff]
    %v465 = vld [vmem:[#allocation7 + $0x170] sm:$0xf]
    %v466 = vld [vmem:[#allocation7 + $0x174] sm:$0xff]
    %v467 = vld [vmem:[#allocation7 + $0x17c] sm:$0xf]
    %v468 = vld [vmem:[#allocation7 + $0x180] sm:$0xff]
    %v469 = vld [vmem:[#allocation7 + $0x188] sm:$0xf]
    %v470 = vld [vmem:[#allocation7 + $0x18c] sm:$0xff]
    %v471 = vld [vmem:[#allocation7 + $0x194] sm:$0xf]
    %v472 = vld [vmem:[#allocation7 + $0x198] sm:$0xff]
    %v473 = vld [vmem:[#allocation7 + $0x1a0] sm:$0xf]
    %v474 = vld [vmem:[#allocation7 + $0x1a4] sm:$0xff]
    %v475 = vld [vmem:[#allocation7 + $0x1ac] sm:$0xf]
    %v476 = vld [vmem:[#allocation7 + $0x1b0] sm:$0xff]
    %v477 = vld [vmem:[#allocation7 + $0x1b8] sm:$0xf]
    %v478 = vld [vmem:[#allocation7 + $0x1bc] sm:$0xff]
    %v479 = vld [vmem:[#allocation7 + $0x1c4] sm:$0xf]
    %v480 = vld [vmem:[#allocation7 + $0x1c8] sm:$0xff]
    %v481 = vld [vmem:[#allocation7 + $0x1d0] sm:$0xf]
    %v482 = vld [vmem:[#allocation7 + $0x1d4] sm:$0xff]
    %v483 = vld [vmem:[#allocation7 + $0x1dc] sm:$0xf]
    %v484 = vld [vmem:[#allocation7 + $0x1e0] sm:$0xff]
    %v485 = vld [vmem:[#allocation7 + $0x1e8] sm:$0xf]
    %v486 = vld [vmem:[#allocation7 + $0x1ec] sm:$0xff]
    %v487 = vld [vmem:[#allocation7 + $0x1f4] sm:$0xf]
    %v488 = vld [vmem:[#allocation7 + $0x1f8] sm:$0xff]
    %v489 = vld [vmem:[#allocation7 + $0x200] sm:$0xf]
    %v490 = vld [vmem:[#allocation7 + $0x204] sm:$0xff]
    %v491 = vld [vmem:[#allocation7 + $0x20c] sm:$0xf]
    %v492 = vld [vmem:[#allocation7 + $0x210] sm:$0xff]
    %v493 = vld [vmem:[#allocation7 + $0x218] sm:$0xf]
    %v494 = vld [vmem:[#allocation7 + $0x21c] sm:$0xff]
    %v495 = vld [vmem:[#allocation7 + $0x224] sm:$0xf]
    %v496 = vld [vmem:[#allocation7 + $0x228] sm:$0xff]
    %v497 = vld [vmem:[#allocation7 + $0x230] sm:$0xf]
    %v498 = vld [vmem:[#allocation7 + $0x234] sm:$0xff]
    %v499 = vld [vmem:[#allocation7 + $0x23c] sm:$0xf]
    %v500 = vld [vmem:[#allocation7 + $0x240] sm:$0xff]
    %v501 = vld [vmem:[#allocation7 + $0x248] sm:$0xf]
    %v502 = vld [vmem:[#allocation7 + $0x24c] sm:$0xff]
    %v503 = vld [vmem:[#allocation7 + $0x254] sm:$0xf]
    %v504 = vld [vmem:[#allocation7 + $0x258] sm:$0xff]
    %v505 = vld [vmem:[#allocation7 + $0x260] sm:$0xf]
    %v506 = vld [vmem:[#allocation7 + $0x264] sm:$0xff]
    %v507 = vld [vmem:[#allocation7 + $0x26c] sm:$0xf]
    %v508 = vld [vmem:[#allocation7 + $0x270] sm:$0xff]
    %v509 = vld [vmem:[#allocation7 + $0x278] sm:$0xf]
    %v510 = vld [vmem:[#allocation7 + $0x27c] sm:$0xff]
    %v511 = vld [vmem:[#allocation7 + $0x284] sm:$0xf]
    %v512 = vld [vmem:[#allocation7 + $0x288] sm:$0xff]
    %v513 = vld [vmem:[#allocation7 + $0x290] sm:$0xf]
    %v514 = vld [vmem:[#allocation7 + $0x294] sm:$0xff]
    %v515 = vld [vmem:[#allocation7 + $0x29c] sm:$0xf]
    %v516 = vld [vmem:[#allocation7 + $0x2a0] sm:$0xff]
    %v517 = vld [vmem:[#allocation7 + $0x2a8] sm:$0xf]
    %v518 = vld [vmem:[#allocation7 + $0x2ac] sm:$0xff]
    %v519 = vld [vmem:[#allocation7 + $0x2b4] sm:$0xf]
    %v520 = vld [vmem:[#allocation7 + $0x2b8] sm:$0xff]
    %v521 = vld [vmem:[#allocation7 + $0x2c0] sm:$0xf]
    %v522 = vld [vmem:[#allocation7 + $0x2c4] sm:$0xff]
    %v523 = vld [vmem:[#allocation7 + $0x2cc] sm:$0xf]
    %v524 = vld [vmem:[#allocation7 + $0x2d0] sm:$0xff]
    %v525 = vld [vmem:[#allocation7 + $0x2d8] sm:$0xf]
    %v526 = vld [vmem:[#allocation7 + $0x2dc] sm:$0xff]
    %v527 = vld [vmem:[#allocation7 + $0x2e4] sm:$0xf]
    %v528 = vld [vmem:[#allocation7 + $0x2e8] sm:$0xff]
    %v529 = vld [vmem:[#allocation7 + $0x2f0] sm:$0xf]
    %v530 = vld [vmem:[#allocation7 + $0x2f4] sm:$0xff]
    %v531 = vld [vmem:[#allocation7 + $0x2fc] sm:$0xf]
    %v532 = vld [vmem:[%s4] sm:$0x7]
    %v534 = vlaneseq
    %v535 = vshrl.u32 %v534, 7
    %v536 = vsub.s32 0, %v535
    %v537 = vrot.slane %v532, %v536
    %v538 = vlaneseq
    %v539 = vshrl.u32 %v538, 7
    %v540 = vsub.s32 1, %v539
    %v541 = vrot.slane %v532, %v540
    %v542 = vlaneseq
    %v543 = vshrl.u32 %v542, 7
    %v544 = vsub.s32 2, %v543
    %v545 = vrot.slane %v532, %v544
    %v677 = vunpack.c.l.b16 %v404
    %v678 = vunpack.c.h.b16 %v404
    %v679 = vunpack.c.l.b16 %v405
    %v680 = vunpack.c.l.b16 %v406
    %v681 = vunpack.c.h.b16 %v406
    %v682 = vunpack.c.l.b16 %v407
    %v683 = vunpack.c.l.b16 %v408
    %v684 = vunpack.c.h.b16 %v408
    %v685 = vunpack.c.l.b16 %v409
    %v686 = vunpack.c.l.b16 %v410
    %v687 = vunpack.c.h.b16 %v410
    %v688 = vunpack.c.l.b16 %v411
    %v689 = vunpack.c.l.b16 %v412
    %v690 = vunpack.c.h.b16 %v412
    %v691 = vunpack.c.l.b16 %v413
    %v692 = vunpack.c.l.b16 %v414
    %v693 = vunpack.c.h.b16 %v414
    %v694 = vunpack.c.l.b16 %v415
    %v695 = vunpack.c.l.b16 %v416
    %v696 = vunpack.c.h.b16 %v416
    %v697 = vunpack.c.l.b16 %v417
    %v698 = vunpack.c.l.b16 %v418
    %v699 = vunpack.c.h.b16 %v418
    %v700 = vunpack.c.l.b16 %v419
    %v701 = vunpack.c.l.b16 %v420
    %v702 = vunpack.c.h.b16 %v420
    %v703 = vunpack.c.l.b16 %v421
    %v704 = vunpack.c.l.b16 %v422
    %v705 = vunpack.c.h.b16 %v422
    %v706 = vunpack.c.l.b16 %v423
    %v707 = vunpack.c.l.b16 %v424
    %v708 = vunpack.c.h.b16 %v424
    %v709 = vunpack.c.l.b16 %v425
    %v710 = vunpack.c.l.b16 %v426
    %v711 = vunpack.c.h.b16 %v426
    %v712 = vunpack.c.l.b16 %v427
    %v713 = vunpack.c.l.b16 %v428
    %v714 = vunpack.c.h.b16 %v428
    %v715 = vunpack.c.l.b16 %v429
    %v716 = vunpack.c.l.b16 %v430
    %v717 = vunpack.c.h.b16 %v430
    %v718 = vunpack.c.l.b16 %v431
    %v719 = vunpack.c.l.b16 %v432
    %v720 = vunpack.c.h.b16 %v432
    %v721 = vunpack.c.l.b16 %v433
    %v722 = vunpack.c.l.b16 %v434
    %v723 = vunpack.c.h.b16 %v434
    %v724 = vunpack.c.l.b16 %v435
    %v725 = vunpack.c.l.b16 %v436
    %v726 = vunpack.c.h.b16 %v436
    %v727 = vunpack.c.l.b16 %v437
    %v728 = vunpack.c.l.b16 %v438
    %v729 = vunpack.c.h.b16 %v438
    %v730 = vunpack.c.l.b16 %v439
    %v731 = vunpack.c.l.b16 %v440
    %v732 = vunpack.c.h.b16 %v440
    %v733 = vunpack.c.l.b16 %v441
    %v734 = vunpack.c.l.b16 %v442
    %v735 = vunpack.c.h.b16 %v442
    %v736 = vunpack.c.l.b16 %v443
    %v737 = vunpack.c.l.b16 %v444
    %v738 = vunpack.c.h.b16 %v444
    %v739 = vunpack.c.l.b16 %v445
    %v740 = vunpack.c.l.b16 %v446
    %v741 = vunpack.c.h.b16 %v446
    %v742 = vunpack.c.l.b16 %v447
    %v743 = vunpack.c.l.b16 %v448
    %v744 = vunpack.c.h.b16 %v448
    %v745 = vunpack.c.l.b16 %v449
    %v746 = vunpack.c.l.b16 %v450
    %v747 = vunpack.c.h.b16 %v450
    %v748 = vunpack.c.l.b16 %v451
    %v749 = vunpack.c.l.b16 %v452
    %v750 = vunpack.c.h.b16 %v452
    %v751 = vunpack.c.l.b16 %v453
    %v752 = vunpack.c.l.b16 %v454
    %v753 = vunpack.c.h.b16 %v454
    %v754 = vunpack.c.l.b16 %v455
    %v755 = vunpack.c.l.b16 %v456
    %v756 = vunpack.c.h.b16 %v456
    %v757 = vunpack.c.l.b16 %v457
    %v758 = vunpack.c.l.b16 %v458
    %v759 = vunpack.c.h.b16 %v458
    %v760 = vunpack.c.l.b16 %v459
    %v761 = vunpack.c.l.b16 %v460
    %v762 = vunpack.c.h.b16 %v460
    %v763 = vunpack.c.l.b16 %v461
    %v764 = vunpack.c.l.b16 %v462
    %v765 = vunpack.c.h.b16 %v462
    %v766 = vunpack.c.l.b16 %v463
    %v767 = vunpack.c.l.b16 %v464
    %v768 = vunpack.c.h.b16 %v464
    %v769 = vunpack.c.l.b16 %v465
    %v770 = vunpack.c.l.b16 %v466
    %v771 = vunpack.c.h.b16 %v466
    %v772 = vunpack.c.l.b16 %v467
    %v773 = vunpack.c.l.b16 %v468
    %v774 = vunpack.c.h.b16 %v468
    %v775 = vunpack.c.l.b16 %v469
    %v776 = vunpack.c.l.b16 %v470
    %v777 = vunpack.c.h.b16 %v470
    %v778 = vunpack.c.l.b16 %v471
    %v779 = vunpack.c.l.b16 %v472
    %v780 = vunpack.c.h.b16 %v472
    %v781 = vunpack.c.l.b16 %v473
    %v782 = vunpack.c.l.b16 %v474
    %v783 = vunpack.c.h.b16 %v474
    %v784 = vunpack.c.l.b16 %v475
    %v785 = vunpack.c.l.b16 %v476
    %v786 = vunpack.c.h.b16 %v476
    %v787 = vunpack.c.l.b16 %v477
    %v788 = vunpack.c.l.b16 %v478
    %v789 = vunpack.c.h.b16 %v478
    %v790 = vunpack.c.l.b16 %v479
    %v791 = vunpack.c.l.b16 %v480
    %v792 = vunpack.c.h.b16 %v480
    %v793 = vunpack.c.l.b16 %v481
    %v794 = vunpack.c.l.b16 %v482
    %v795 = vunpack.c.h.b16 %v482
    %v796 = vunpack.c.l.b16 %v483
    %v797 = vunpack.c.l.b16 %v484
    %v798 = vunpack.c.h.b16 %v484
    %v799 = vunpack.c.l.b16 %v485
    %v800 = vunpack.c.l.b16 %v486
    %v801 = vunpack.c.h.b16 %v486
    %v802 = vunpack.c.l.b16 %v487
    %v803 = vunpack.c.l.b16 %v488
    %v804 = vunpack.c.h.b16 %v488
    %v805 = vunpack.c.l.b16 %v489
    %v806 = vunpack.c.l.b16 %v490
    %v807 = vunpack.c.h.b16 %v490
    %v808 = vunpack.c.l.b16 %v491
    %v809 = vunpack.c.l.b16 %v492
    %v810 = vunpack.c.h.b16 %v492
    %v811 = vunpack.c.l.b16 %v493
    %v812 = vunpack.c.l.b16 %v494
    %v813 = vunpack.c.h.b16 %v494
    %v814 = vunpack.c.l.b16 %v495
    %v815 = vunpack.c.l.b16 %v496
    %v816 = vunpack.c.h.b16 %v496
    %v817 = vunpack.c.l.b16 %v497
    %v818 = vunpack.c.l.b16 %v498
    %v819 = vunpack.c.h.b16 %v498
    %v820 = vunpack.c.l.b16 %v499
    %v821 = vunpack.c.l.b16 %v500
    %v822 = vunpack.c.h.b16 %v500
    %v823 = vunpack.c.l.b16 %v501
    %v824 = vunpack.c.l.b16 %v502
    %v825 = vunpack.c.h.b16 %v502
    %v826 = vunpack.c.l.b16 %v503
    %v827 = vunpack.c.l.b16 %v504
    %v828 = vunpack.c.h.b16 %v504
    %v829 = vunpack.c.l.b16 %v505
    %v830 = vunpack.c.l.b16 %v506
    %v831 = vunpack.c.h.b16 %v506
    %v832 = vunpack.c.l.b16 %v507
    %v833 = vunpack.c.l.b16 %v508
    %v834 = vunpack.c.h.b16 %v508
    %v835 = vunpack.c.l.b16 %v509
    %v836 = vunpack.c.l.b16 %v510
    %v837 = vunpack.c.h.b16 %v510
    %v838 = vunpack.c.l.b16 %v511
    %v839 = vunpack.c.l.b16 %v512
    %v840 = vunpack.c.h.b16 %v512
    %v841 = vunpack.c.l.b16 %v513
    %v842 = vunpack.c.l.b16 %v514
    %v843 = vunpack.c.h.b16 %v514
    %v844 = vunpack.c.l.b16 %v515
    %v845 = vunpack.c.l.b16 %v516
    %v846 = vunpack.c.h.b16 %v516
    %v847 = vunpack.c.l.b16 %v517
    %v848 = vunpack.c.l.b16 %v518
    %v849 = vunpack.c.h.b16 %v518
    %v850 = vunpack.c.l.b16 %v519
    %v851 = vunpack.c.l.b16 %v520
    %v852 = vunpack.c.h.b16 %v520
    %v853 = vunpack.c.l.b16 %v521
    %v854 = vunpack.c.l.b16 %v522
    %v855 = vunpack.c.h.b16 %v522
    %v856 = vunpack.c.l.b16 %v523
    %v857 = vunpack.c.l.b16 %v524
    %v858 = vunpack.c.h.b16 %v524
    %v859 = vunpack.c.l.b16 %v525
    %v860 = vunpack.c.l.b16 %v526
    %v861 = vunpack.c.h.b16 %v526
    %v862 = vunpack.c.l.b16 %v527
    %v863 = vunpack.c.l.b16 %v528
    %v864 = vunpack.c.h.b16 %v528
    %v865 = vunpack.c.l.b16 %v529
    %v866 = vunpack.c.l.b16 %v530
    %v867 = vunpack.c.h.b16 %v530
    %v868 = vunpack.c.l.b16 %v531
    %v869 = vpack.c.b16 %v680, %v677
    %v870 = vpack.c.b16 %v681, %v678
    %v871 = vpack.c.b16 %v682, %v679
    %v872 = vpack.c.b16 %v686, %v683
    %v873 = vpack.c.b16 %v687, %v684
    %v874 = vpack.c.b16 %v688, %v685
    %v875 = vpack.c.b16 %v692, %v689
    %v876 = vpack.c.b16 %v693, %v690
    %v877 = vpack.c.b16 %v694, %v691
    %v878 = vpack.c.b16 %v698, %v695
    %v879 = vpack.c.b16 %v699, %v696
    %v880 = vpack.c.b16 %v700, %v697
    %v881 = vpack.c.b16 %v704, %v701
    %v882 = vpack.c.b16 %v705, %v702
    %v883 = vpack.c.b16 %v706, %v703
    %v884 = vpack.c.b16 %v710, %v707
    %v885 = vpack.c.b16 %v711, %v708
    %v886 = vpack.c.b16 %v712, %v709
    %v887 = vpack.c.b16 %v716, %v713
    %v888 = vpack.c.b16 %v717, %v714
    %v889 = vpack.c.b16 %v718, %v715
    %v890 = vpack.c.b16 %v722, %v719
    %v891 = vpack.c.b16 %v723, %v720
    %v892 = vpack.c.b16 %v724, %v721
    %v893 = vpack.c.b16 %v728, %v725
    %v894 = vpack.c.b16 %v729, %v726
    %v895 = vpack.c.b16 %v730, %v727
    %v896 = vpack.c.b16 %v734, %v731
    %v897 = vpack.c.b16 %v735, %v732
    %v898 = vpack.c.b16 %v736, %v733
    %v899 = vpack.c.b16 %v740, %v737
    %v900 = vpack.c.b16 %v741, %v738
    %v901 = vpack.c.b16 %v742, %v739
    %v902 = vpack.c.b16 %v746, %v743
    %v903 = vpack.c.b16 %v747, %v744
    %v904 = vpack.c.b16 %v748, %v745
    %v905 = vpack.c.b16 %v752, %v749
    %v906 = vpack.c.b16 %v753, %v750
    %v907 = vpack.c.b16 %v754, %v751
    %v908 = vpack.c.b16 %v758, %v755
    %v909 = vpack.c.b16 %v759, %v756
    %v910 = vpack.c.b16 %v760, %v757
    %v911 = vpack.c.b16 %v764, %v761
    %v912 = vpack.c.b16 %v765, %v762
    %v913 = vpack.c.b16 %v766, %v763
    %v914 = vpack.c.b16 %v770, %v767
    %v915 = vpack.c.b16 %v771, %v768
    %v916 = vpack.c.b16 %v772, %v769
    %v917 = vpack.c.b16 %v776, %v773
    %v918 = vpack.c.b16 %v777, %v774
    %v919 = vpack.c.b16 %v778, %v775
    %v920 = vpack.c.b16 %v782, %v779
    %v921 = vpack.c.b16 %v783, %v780
    %v922 = vpack.c.b16 %v784, %v781
    %v923 = vpack.c.b16 %v788, %v785
    %v924 = vpack.c.b16 %v789, %v786
    %v925 = vpack.c.b16 %v790, %v787
    %v926 = vpack.c.b16 %v794, %v791
    %v927 = vpack.c.b16 %v795, %v792
    %v928 = vpack.c.b16 %v796, %v793
    %v929 = vpack.c.b16 %v800, %v797
    %v930 = vpack.c.b16 %v801, %v798
    %v931 = vpack.c.b16 %v802, %v799
    %v932 = vpack.c.b16 %v806, %v803
    %v933 = vpack.c.b16 %v807, %v804
    %v934 = vpack.c.b16 %v808, %v805
    %v935 = vpack.c.b16 %v812, %v809
    %v936 = vpack.c.b16 %v813, %v810
    %v937 = vpack.c.b16 %v814, %v811
    %v938 = vpack.c.b16 %v818, %v815
    %v939 = vpack.c.b16 %v819, %v816
    %v940 = vpack.c.b16 %v820, %v817
    %v941 = vpack.c.b16 %v824, %v821
    %v942 = vpack.c.b16 %v825, %v822
    %v943 = vpack.c.b16 %v826, %v823
    %v944 = vpack.c.b16 %v830, %v827
    %v945 = vpack.c.b16 %v831, %v828
    %v946 = vpack.c.b16 %v832, %v829
    %v947 = vpack.c.b16 %v836, %v833
    %v948 = vpack.c.b16 %v837, %v834
    %v949 = vpack.c.b16 %v838, %v835
    %v950 = vpack.c.b16 %v842, %v839
    %v951 = vpack.c.b16 %v843, %v840
    %v952 = vpack.c.b16 %v844, %v841
    %v953 = vpack.c.b16 %v848, %v845
    %v954 = vpack.c.b16 %v849, %v846
    %v955 = vpack.c.b16 %v850, %v847
    %v956 = vpack.c.b16 %v854, %v851
    %v957 = vpack.c.b16 %v855, %v852
    %v958 = vpack.c.b16 %v856, %v853
    %v959 = vpack.c.b16 %v860, %v857
    %v960 = vpack.c.b16 %v861, %v858
    %v961 = vpack.c.b16 %v862, %v859
    %v962 = vpack.c.b16 %v866, %v863
    %v963 = vpack.c.b16 %v867, %v864
    %v964 = vpack.c.b16 %v868, %v865
    %1061 = vmatprep.subr.bf16.mxu0 %v891
    %1062 = vmatpush1.bf16.msra.mxu0 %v890
    %1063 = vmatprep.subr.bf16.mxu0 %v888
    %1064 = vmatpush1.bf16.msra.mxu0 %v887
    %1065 = vmatprep.subr.bf16.mxu0 %v885
    %1066 = vmatpush1.bf16.msra.mxu0 %v884
    %1067 = vmatprep.subr.bf16.mxu0 %v882
    %1068 = vmatpush1.bf16.msra.mxu0 %v881
    %1069 = vmatprep.subr.bf16.mxu0 %v879
    %1070 = vmatpush1.bf16.msra.mxu0 %v878
    %1071 = vmatprep.subr.bf16.mxu0 %v876
    %1072 = vmatpush1.bf16.msra.mxu0 %v875
    %1073 = vmatprep.subr.bf16.mxu0 %v873
    %1074 = vmatpush1.bf16.msra.mxu0 %v872
    %1075 = vmatprep.subr.bf16.mxu0 %v870
    %1076 = vmatpush1.bf16.msra.mxu0 %v869
    %1077 = vmatprep.subr.bf16.mxu0 %v915
    %1078 = vmatpush2.bf16.msra.mxu0 %v914
    %1079 = vmatprep.subr.bf16.mxu0 %v912
    %1080 = vmatpush2.bf16.msra.mxu0 %v911
    %1081 = vmatprep.subr.bf16.mxu0 %v909
    %1082 = vmatpush2.bf16.msra.mxu0 %v908
    %1083 = vmatprep.subr.bf16.mxu0 %v906
    %1084 = vmatpush2.bf16.msra.mxu0 %v905
    %1085 = vmatprep.subr.bf16.mxu0 %v903
    %1086 = vmatpush2.bf16.msra.mxu0 %v902
    %1087 = vmatprep.subr.bf16.mxu0 %v900
    %1088 = vmatpush2.bf16.msra.mxu0 %v899
    %1089 = vmatprep.subr.bf16.mxu0 %v897
    %1090 = vmatpush2.bf16.msra.mxu0 %v896
    %1091 = vmatprep.subr.bf16.mxu0 %v894
    %1092 = vmatpush2.bf16.msra.mxu0 %v893
    %1093 = vmatprep.mubr.bf16.mxu0 %v401
    %1094 = vmatmul.mubr.bf16.gmra.mxu0 %v400
    %v1095 = vpop.f32.mrf.mxu0
    %v1096 = vadd.f32 %v537, %v1095
    %v1097 = vpop.f32.mrf.mxu0
    %v1098 = vadd.f32 %v541, %v1097
    %v1099 = vpop.f32.mrf.mxu0
    %v1100 = vadd.f32 %v537, %v1099
    %v1101 = vpop.f32.mrf.mxu0
    %v1102 = vadd.f32 %v541, %v1101
    %1103 = vdwg.mxu0
    %1104 = vmatprep.subr.bf16.mxu0 %v939
    %1105 = vmatpush1.bf16.msra.mxu0 %v938
    %1106 = vmatprep.subr.bf16.mxu0 %v936
    %1107 = vmatpush1.bf16.msra.mxu0 %v935
    %1108 = vmatprep.subr.bf16.mxu0 %v933
    %1109 = vmatpush1.bf16.msra.mxu0 %v932
    %1110 = vmatprep.subr.bf16.mxu0 %v930
    %1111 = vmatpush1.bf16.msra.mxu0 %v929
    %1112 = vmatprep.subr.bf16.mxu0 %v927
    %1113 = vmatpush1.bf16.msra.mxu0 %v926
    %1114 = vmatprep.subr.bf16.mxu0 %v924
    %1115 = vmatpush1.bf16.msra.mxu0 %v923
    %1116 = vmatprep.subr.bf16.mxu0 %v921
    %1117 = vmatpush1.bf16.msra.mxu0 %v920
    %1118 = vmatprep.subr.bf16.mxu0 %v918
    %1119 = vmatpush1.bf16.msra.mxu0 %v917
    %1120 = vmatprep.subr.bf16.mxu0 %v963
    %1121 = vmatpush2.bf16.msra.mxu0 %v962
    %1122 = vmatprep.subr.bf16.mxu0 %v960
    %1123 = vmatpush2.bf16.msra.mxu0 %v959
    %1124 = vmatprep.subr.bf16.mxu0 %v957
    %1125 = vmatpush2.bf16.msra.mxu0 %v956
    %1126 = vmatprep.subr.bf16.mxu0 %v954
    %1127 = vmatpush2.bf16.msra.mxu0 %v953
    %1128 = vmatprep.subr.bf16.mxu0 %v951
    %1129 = vmatpush2.bf16.msra.mxu0 %v950
    %1130 = vmatprep.subr.bf16.mxu0 %v948
    %1131 = vmatpush2.bf16.msra.mxu0 %v947
    %1132 = vmatprep.subr.bf16.mxu0 %v945
    %1133 = vmatpush2.bf16.msra.mxu0 %v944
    %1134 = vmatprep.subr.bf16.mxu0 %v942
    %1135 = vmatpush2.bf16.msra.mxu0 %v941
    %1136 = vmatprep.mubr.bf16.mxu0 %v403
    %1137 = vmatmul.mubr.bf16.gmra.mxu0 %v402
    %v1138 = vpop.f32.mrf.mxu0
    %v1139 = vadd.f32 %v1096, %v1138
    %v1140 = vpop.f32.mrf.mxu0
    %v1141 = vadd.f32 %v1098, %v1140
    %v1142 = vpop.f32.mrf.mxu0
    %v1143 = vadd.f32 %v1100, %v1142
    %v1144 = vpop.f32.mrf.mxu0
    %v1145 = vadd.f32 %v1102, %v1144
    %1146 = vdwg.mxu0
    %1147 = vmatprep.subr.bf16.mxu0 0
    %1148 = vmatpush1.bf16.msra.mxu0 %v892
    %1149 = vmatprep.subr.bf16.mxu0 0
    %1150 = vmatpush1.bf16.msra.mxu0 %v889
    %1151 = vmatprep.subr.bf16.mxu0 0
    %1152 = vmatpush1.bf16.msra.mxu0 %v886
    %1153 = vmatprep.subr.bf16.mxu0 0
    %1154 = vmatpush1.bf16.msra.mxu0 %v883
    %1155 = vmatprep.subr.bf16.mxu0 0
    %1156 = vmatpush1.bf16.msra.mxu0 %v880
    %1157 = vmatprep.subr.bf16.mxu0 0
    %1158 = vmatpush1.bf16.msra.mxu0 %v877
    %1159 = vmatprep.subr.bf16.mxu0 0
    %1160 = vmatpush1.bf16.msra.mxu0 %v874
    %1161 = vmatprep.subr.bf16.mxu0 0
    %1162 = vmatpush1.bf16.msra.mxu0 %v871
    %1163 = vmatprep.subr.bf16.mxu0 0
    %1164 = vmatpush2.bf16.msra.mxu0 %v916
    %1165 = vmatprep.subr.bf16.mxu0 0
    %1166 = vmatpush2.bf16.msra.mxu0 %v913
    %1167 = vmatprep.subr.bf16.mxu0 0
    %1168 = vmatpush2.bf16.msra.mxu0 %v910
    %1169 = vmatprep.subr.bf16.mxu0 0
    %1170 = vmatpush2.bf16.msra.mxu0 %v907
    %1171 = vmatprep.subr.bf16.mxu0 0
    %1172 = vmatpush2.bf16.msra.mxu0 %v904
    %1173 = vmatprep.subr.bf16.mxu0 0
    %1174 = vmatpush2.bf16.msra.mxu0 %v901
    %1175 = vmatprep.subr.bf16.mxu0 0
    %1176 = vmatpush2.bf16.msra.mxu0 %v898
    %1177 = vmatprep.subr.bf16.mxu0 0
    %1178 = vmatpush2.bf16.msra.mxu0 %v895
    %1179 = vmatprep.mubr.bf16.mxu0 %v401
    %1180 = vmatmul.mubr.bf16.gmra.mxu0 %v400
    %v1181 = vpop.f32.mrf.mxu0
    %v1182 = vadd.f32 %v545, %v1181
    %v1183 = vpop.f32.mrf.mxu0
    %v1184 = vpop.f32.mrf.mxu0
    %v1185 = vadd.f32 %v545, %v1184
    %v1186 = vpop.f32.mrf.mxu0
    %1187 = vdwg.mxu0
    %1188 = vmatprep.subr.bf16.mxu0 0
    %1189 = vmatpush1.bf16.msra.mxu0 %v940
    %1190 = vmatprep.subr.bf16.mxu0 0
    %1191 = vmatpush1.bf16.msra.mxu0 %v937
    %1192 = vmatprep.subr.bf16.mxu0 0
    %1193 = vmatpush1.bf16.msra.mxu0 %v934
    %1194 = vmatprep.subr.bf16.mxu0 0
    %1195 = vmatpush1.bf16.msra.mxu0 %v931
    %1196 = vmatprep.subr.bf16.mxu0 0
    %1197 = vmatpush1.bf16.msra.mxu0 %v928
    %1198 = vmatprep.subr.bf16.mxu0 0
    %1199 = vmatpush1.bf16.msra.mxu0 %v925
    %1200 = vmatprep.subr.bf16.mxu0 0
    %1201 = vmatpush1.bf16.msra.mxu0 %v922
    %1202 = vmatprep.subr.bf16.mxu0 0
    %1203 = vmatpush1.bf16.msra.mxu0 %v919
    %1204 = vmatprep.subr.bf16.mxu0 0
    %1205 = vmatpush2.bf16.msra.mxu0 %v964
    %1206 = vmatprep.subr.bf16.mxu0 0
    %1207 = vmatpush2.bf16.msra.mxu0 %v961
    %1208 = vmatprep.subr.bf16.mxu0 0
    %1209 = vmatpush2.bf16.msra.mxu0 %v958
    %1210 = vmatprep.subr.bf16.mxu0 0
    %1211 = vmatpush2.bf16.msra.mxu0 %v955
    %1212 = vmatprep.subr.bf16.mxu0 0
    %1213 = vmatpush2.bf16.msra.mxu0 %v952
    %1214 = vmatprep.subr.bf16.mxu0 0
    %1215 = vmatpush2.bf16.msra.mxu0 %v949
    %1216 = vmatprep.subr.bf16.mxu0 0
    %1217 = vmatpush2.bf16.msra.mxu0 %v946
    %1218 = vmatprep.subr.bf16.mxu0 0
    %1219 = vmatpush2.bf16.msra.mxu0 %v943
    %1220 = vmatprep.mubr.bf16.mxu0 %v403
    %1221 = vmatmul.mubr.bf16.gmra.mxu0 %v402
    %v1222 = vpop.f32.mrf.mxu0
    %v1223 = vadd.f32 %v1182, %v1222
    %v1224 = vpop.f32.mrf.mxu0
    %v1225 = vpop.f32.mrf.mxu0
    %v1226 = vadd.f32 %v1185, %v1225
    %v1227 = vpop.f32.mrf.mxu0
    %1228 = vdwg.mxu0
    %v1229 = vmax.f32 %v1139, 0.0
    %v1230 = vmax.f32 %v1141, 0.0
    %v1231 = vmax.f32 %v1223, 0.0
    %v1232 = vmax.f32 %v1143, 0.0
    %v1233 = vmax.f32 %v1145, 0.0
    %v1234 = vmax.f32 %v1226, 0.0
    %v1235 = vpack.c.bf16 %v1232, %v1229
    %v1236 = vpack.c.bf16 %v1233, %v1230
    %v1237 = vpack.c.bf16 %v1234, %v1231
    %v1238 = vld [vmem:[#allocation8] sm:$0xf]
    %v1239 = vld [vmem:[#allocation8 + $0x4] sm:$0xf]
    %v1240 = vld [vmem:[#allocation8 + $0x8] sm:$0xf]
    %v1241 = vld [vmem:[#allocation8 + $0xc] sm:$0xf]
    %v1242 = vld [vmem:[#allocation8 + $0x10] sm:$0xf]
    %v1243 = vld [vmem:[#allocation8 + $0x14] sm:$0xf]
    %v1244 = vld [vmem:[#allocation8 + $0x18] sm:$0xf]
    %v1245 = vld [vmem:[#allocation8 + $0x1c] sm:$0xf]
    %v1246 = vld [vmem:[#allocation8 + $0x20] sm:$0xf]
    %v1247 = vld [vmem:[#allocation8 + $0x24] sm:$0xf]
    %v1248 = vld [vmem:[#allocation8 + $0x28] sm:$0xf]
    %v1249 = vld [vmem:[#allocation8 + $0x2c] sm:$0xf]
    %v1250 = vld [vmem:[#allocation8 + $0x30] sm:$0xf]
    %v1251 = vld [vmem:[#allocation8 + $0x34] sm:$0xf]
    %v1252 = vld [vmem:[#allocation8 + $0x38] sm:$0xf]
    %v1253 = vld [vmem:[#allocation8 + $0x3c] sm:$0xf]
    %v1254 = vld [vmem:[#allocation8 + $0x40] sm:$0xf]
    %v1255 = vld [vmem:[#allocation8 + $0x44] sm:$0xf]
    %v1256 = vld [vmem:[#allocation8 + $0x48] sm:$0xf]
    %v1257 = vld [vmem:[#allocation8 + $0x4c] sm:$0xf]
    %v1258 = vld [vmem:[#allocation8 + $0x50] sm:$0xf]
    %v1259 = vld [vmem:[#allocation8 + $0x54] sm:$0xf]
    %v1260 = vld [vmem:[#allocation8 + $0x58] sm:$0xf]
    %v1261 = vld [vmem:[#allocation8 + $0x5c] sm:$0xf]
    %v1262 = vld [vmem:[#allocation8 + $0x60] sm:$0xf]
    %v1263 = vld [vmem:[#allocation8 + $0x64] sm:$0xf]
    %v1264 = vld [vmem:[#allocation8 + $0x68] sm:$0xf]
    %v1265 = vld [vmem:[#allocation8 + $0x6c] sm:$0xf]
    %v1266 = vld [vmem:[#allocation8 + $0x70] sm:$0xf]
    %v1267 = vld [vmem:[#allocation8 + $0x74] sm:$0xf]
    %v1268 = vld [vmem:[#allocation8 + $0x78] sm:$0xf]
    %v1269 = vld [vmem:[#allocation8 + $0x7c] sm:$0xf]
    %v1270 = vld [vmem:[#allocation8 + $0x80] sm:$0xf]
    %v1271 = vld [vmem:[#allocation8 + $0x84] sm:$0xf]
    %v1272 = vld [vmem:[#allocation8 + $0x88] sm:$0xf]
    %v1273 = vld [vmem:[#allocation8 + $0x8c] sm:$0xf]
    %v1274 = vld [vmem:[#allocation8 + $0x90] sm:$0xf]
    %v1275 = vld [vmem:[#allocation8 + $0x94] sm:$0xf]
    %v1276 = vld [vmem:[#allocation8 + $0x98] sm:$0xf]
    %v1277 = vld [vmem:[#allocation8 + $0x9c] sm:$0xf]
    %v1278 = vld [vmem:[#allocation8 + $0xa0] sm:$0xf]
    %v1279 = vld [vmem:[#allocation8 + $0xa4] sm:$0xf]
    %v1280 = vld [vmem:[#allocation8 + $0xa8] sm:$0xf]
    %v1281 = vld [vmem:[#allocation8 + $0xac] sm:$0xf]
    %v1282 = vld [vmem:[#allocation8 + $0xb0] sm:$0xf]
    %v1283 = vld [vmem:[#allocation8 + $0xb4] sm:$0xf]
    %v1284 = vld [vmem:[#allocation8 + $0xb8] sm:$0xf]
    %v1285 = vld [vmem:[#allocation8 + $0xbc] sm:$0xf]
    %v1334 = vunpack.c.l.b16 %v1238
    %v1335 = vunpack.c.l.b16 %v1239
    %v1336 = vunpack.c.l.b16 %v1240
    %v1337 = vunpack.c.l.b16 %v1241
    %v1338 = vunpack.c.l.b16 %v1242
    %v1339 = vunpack.c.l.b16 %v1243
    %v1340 = vunpack.c.l.b16 %v1244
    %v1341 = vunpack.c.l.b16 %v1245
    %v1342 = vunpack.c.l.b16 %v1246
    %v1343 = vunpack.c.l.b16 %v1247
    %v1344 = vunpack.c.l.b16 %v1248
    %v1345 = vunpack.c.l.b16 %v1249
    %v1346 = vunpack.c.l.b16 %v1250
    %v1347 = vunpack.c.l.b16 %v1251
    %v1348 = vunpack.c.l.b16 %v1252
    %v1349 = vunpack.c.l.b16 %v1253
    %v1350 = vunpack.c.l.b16 %v1254
    %v1351 = vunpack.c.l.b16 %v1255
    %v1352 = vunpack.c.l.b16 %v1256
    %v1353 = vunpack.c.l.b16 %v1257
    %v1354 = vunpack.c.l.b16 %v1258
    %v1355 = vunpack.c.l.b16 %v1259
    %v1356 = vunpack.c.l.b16 %v1260
    %v1357 = vunpack.c.l.b16 %v1261
    %v1358 = vunpack.c.l.b16 %v1262
    %v1359 = vunpack.c.l.b16 %v1263
    %v1360 = vunpack.c.l.b16 %v1264
    %v1361 = vunpack.c.l.b16 %v1265
    %v1362 = vunpack.c.l.b16 %v1266
    %v1363 = vunpack.c.l.b16 %v1267
    %v1364 = vunpack.c.l.b16 %v1268
    %v1365 = vunpack.c.l.b16 %v1269
    %v1366 = vunpack.c.l.b16 %v1270
    %v1367 = vunpack.c.l.b16 %v1271
    %v1368 = vunpack.c.l.b16 %v1272
    %v1369 = vunpack.c.l.b16 %v1273
    %v1370 = vunpack.c.l.b16 %v1274
    %v1371 = vunpack.c.l.b16 %v1275
    %v1372 = vunpack.c.l.b16 %v1276
    %v1373 = vunpack.c.l.b16 %v1277
    %v1374 = vunpack.c.l.b16 %v1278
    %v1375 = vunpack.c.l.b16 %v1279
    %v1376 = vunpack.c.l.b16 %v1280
    %v1377 = vunpack.c.l.b16 %v1281
    %v1378 = vunpack.c.l.b16 %v1282
    %v1379 = vunpack.c.l.b16 %v1283
    %v1380 = vunpack.c.l.b16 %v1284
    %v1381 = vunpack.c.l.b16 %v1285
    %v1382 = vpack.c.b16 %v1335, %v1334
    %v1383 = vpack.c.b16 %v1337, %v1336
    %v1384 = vpack.c.b16 %v1339, %v1338
    %v1385 = vpack.c.b16 %v1341, %v1340
    %v1386 = vpack.c.b16 %v1343, %v1342
    %v1387 = vpack.c.b16 %v1345, %v1344
    %v1388 = vpack.c.b16 %v1347, %v1346
    %v1389 = vpack.c.b16 %v1349, %v1348
    %v1390 = vpack.c.b16 %v1351, %v1350
    %v1391 = vpack.c.b16 %v1353, %v1352
    %v1392 = vpack.c.b16 %v1355, %v1354
    %v1393 = vpack.c.b16 %v1357, %v1356
    %v1394 = vpack.c.b16 %v1359, %v1358
    %v1395 = vpack.c.b16 %v1361, %v1360
    %v1396 = vpack.c.b16 %v1363, %v1362
    %v1397 = vpack.c.b16 %v1365, %v1364
    %v1398 = vpack.c.b16 %v1367, %v1366
    %v1399 = vpack.c.b16 %v1369, %v1368
    %v1400 = vpack.c.b16 %v1371, %v1370
    %v1401 = vpack.c.b16 %v1373, %v1372
    %v1402 = vpack.c.b16 %v1375, %v1374
    %v1403 = vpack.c.b16 %v1377, %v1376
    %v1404 = vpack.c.b16 %v1379, %v1378
    %v1405 = vpack.c.b16 %v1381, %v1380
    %1430 = vmatprep.subr.bf16.mxu0 0
    %1431 = vmatpush1.bf16.msra.mxu0 %v1389
    %1432 = vmatprep.subr.bf16.mxu0 0
    %1433 = vmatpush1.bf16.msra.mxu0 %v1388
    %1434 = vmatprep.subr.bf16.mxu0 0
    %1435 = vmatpush1.bf16.msra.mxu0 %v1387
    %1436 = vmatprep.subr.bf16.mxu0 0
    %1437 = vmatpush1.bf16.msra.mxu0 %v1386
    %1438 = vmatprep.subr.bf16.mxu0 0
    %1439 = vmatpush1.bf16.msra.mxu0 %v1385
    %1440 = vmatprep.subr.bf16.mxu0 0
    %1441 = vmatpush1.bf16.msra.mxu0 %v1384
    %1442 = vmatprep.subr.bf16.mxu0 0
    %1443 = vmatpush1.bf16.msra.mxu0 %v1383
    %1444 = vmatprep.subr.bf16.mxu0 0
    %1445 = vmatpush1.bf16.msra.mxu0 %v1382
    %1446 = vmatprep.subr.bf16.mxu0 0
    %1447 = vmatpush2.bf16.msra.mxu0 %v1397
    %1448 = vmatprep.subr.bf16.mxu0 0
    %1449 = vmatpush2.bf16.msra.mxu0 %v1396
    %1450 = vmatprep.subr.bf16.mxu0 0
    %1451 = vmatpush2.bf16.msra.mxu0 %v1395
    %1452 = vmatprep.subr.bf16.mxu0 0
    %1453 = vmatpush2.bf16.msra.mxu0 %v1394
    %1454 = vmatprep.subr.bf16.mxu0 0
    %1455 = vmatpush2.bf16.msra.mxu0 %v1393
    %1456 = vmatprep.subr.bf16.mxu0 0
    %1457 = vmatpush2.bf16.msra.mxu0 %v1392
    %1458 = vmatprep.subr.bf16.mxu0 0
    %1459 = vmatpush2.bf16.msra.mxu0 %v1391
    %1460 = vmatprep.subr.bf16.mxu0 0
    %1461 = vmatpush2.bf16.msra.mxu0 %v1390
    %1462 = vmatprep.mubr.bf16.mxu0 %v1236
    %1463 = vmatmul.mubr.bf16.gmra.mxu0 %v1235
    %v1464 = vpop.f32.mrf.mxu0
    %v1465 = vadd.f32 0.0, %v1464
    %v1466 = vpop.f32.mrf.mxu0
    %v1467 = vpop.f32.mrf.mxu0
    %v1468 = vadd.f32 0.0, %v1467
    %v1469 = vpop.f32.mrf.mxu0
    %1470 = vdwg.mxu0
    %1471 = vmatprep.subr.bf16.mxu0 0
    %1472 = vmatpush1.bf16.msra.mxu0 %v1405
    %1473 = vmatprep.subr.bf16.mxu0 0
    %1474 = vmatpush1.bf16.msra.mxu0 %v1404
    %1475 = vmatprep.subr.bf16.mxu0 0
    %1476 = vmatpush1.bf16.msra.mxu0 %v1403
    %1477 = vmatprep.subr.bf16.mxu0 0
    %1478 = vmatpush1.bf16.msra.mxu0 %v1402
    %1479 = vmatprep.subr.bf16.mxu0 0
    %1480 = vmatpush1.bf16.msra.mxu0 %v1401
    %1481 = vmatprep.subr.bf16.mxu0 0
    %1482 = vmatpush1.bf16.msra.mxu0 %v1400
    %1483 = vmatprep.subr.bf16.mxu0 0
    %1484 = vmatpush1.bf16.msra.mxu0 %v1399
    %1485 = vmatprep.subr.bf16.mxu0 0
    %1486 = vmatpush1.bf16.msra.mxu0 %v1398
    %1487 = vmatprep.subr.bf16.mxu0 0
    %1488 = vmatpush2.bf16.msra.mxu0 0
    %1489 = vmatprep.subr.bf16.mxu0 0
    %1490 = vmatpush2.bf16.msra.mxu0 0
    %1491 = vmatprep.subr.bf16.mxu0 0
    %1492 = vmatpush2.bf16.msra.mxu0 0
    %1493 = vmatprep.subr.bf16.mxu0 0
    %1494 = vmatpush2.bf16.msra.mxu0 0
    %1495 = vmatprep.subr.bf16.mxu0 0
    %1496 = vmatpush2.bf16.msra.mxu0 0
    %1497 = vmatprep.subr.bf16.mxu0 0
    %1498 = vmatpush2.bf16.msra.mxu0 0
    %1499 = vmatprep.subr.bf16.mxu0 0
    %1500 = vmatpush2.bf16.msra.mxu0 0
    %1501 = vmatprep.subr.bf16.mxu0 0
    %1502 = vmatpush2.bf16.msra.mxu0 0
    %1503 = vmatprep.mubr.bf16.mxu0 0
    %1504 = vmatmul.mubr.bf16.gmra.mxu0 %v1237
    %v1505 = vpop.f32.mrf.mxu0
    %v1506 = vadd.f32 %v1465, %v1505
    %v1507 = vpop.f32.mrf.mxu0
    %v1508 = vpop.f32.mrf.mxu0
    %v1509 = vadd.f32 %v1468, %v1508
    %v1510 = vpop.f32.mrf.mxu0
    %1511 = vdwg.mxu0
    %v1512 = vld [vmem:[#allocation2] sm:$0x1]
    %v1514 = vlaneseq
    %v1515 = vshrl.u32 %v1514, 7
    %v1516 = vsub.s32 0, %v1515
    %v1517 = vrot.slane %v1512, %v1516
    %v1519 = vadd.f32 %v1506, %v1517
    %v1520 = vadd.f32 %v1509, %v1517
    %vm1521 = vcmask 7168
    %1522 = vst.msk [vmem:[%s7] sm:$0xff] %vm1521, %v1519
    %1523 = vst.msk [vmem:[%s7 + $0x8] sm:$0xff] %vm1521, %v1520
    // Predicated region
    $region46: #{tpu_custom_call.1} parent=1 // pred_check
      _
    $region47: #{tpu_custom_call.1} parent=1 // pred_check_branch
      %1525 = sbr.rel (0) target = $region49
    $region48: #{tpu_custom_call.1} parent=1 // pred_region
      _
    $region49: #{tpu_custom_call.1} parent=1 // pred_fallthru
      _
    // Predicated region
    $region50: #{tpu_custom_call.1} parent=1 // pred_check
      _
    $region51: #{tpu_custom_call.1} parent=1 // pred_check_branch
      %1527 = sbr.rel (0) target = $region53
    $region52: #{tpu_custom_call.1} parent=1 // pred_region
      _
    $region53: #{tpu_custom_call.1} parent=1 // pred_fallthru
      _
    %1528 = vsyncpa [#allocation4], 1
    %1529 = vsyncpa [#allocation6], 1
    %1530 = vsyncpa [#allocation9], 1

</llo_original>
